<compile_context>
chip_gen: v5e
topology: v5e:2x2
jax: 0.10.0
libtpu: 0.0.40
codegen_flags: <defaults>
</compile_context>

<pallas_src>
import jax
import jax.numpy as jnp
from jax.experimental import pallas as pl
from jax.experimental.pallas import tpu as pltpu


def _round_up(n, m):
    return ((n + m - 1) // m) * m


def _pad_to(a, shape):
    pads = [(0, s - d) for d, s in zip(a.shape, shape)]
    if all(p == (0, 0) for p in pads):
        return a
    return jnp.pad(a, pads)


def pad_head_params(params):
    """Pad params ONCE (init time) to lane-dense shapes.

    params: (w1 [d_in,300], b1 [1,300], w2 [300,100], b2 [1,100],
             w3 [100,num_labels], b3 [1,num_labels])  -- w* pre-transposed
             to [in, out].
    Returns (padded_params, (d1, d2, d3)) where output columns are padded to
    multiples of 128 and the K dims of w2/w3 are padded to match the padded
    activations (zero rows contribute nothing).
    """
    w1, b1, w2, b2, w3, b3 = params
    d_in = w1.shape[0]
    d1, d2, d3 = w1.shape[1], w2.shape[1], w3.shape[1]
    d1p = _round_up(d1, 128)
    d2p = _round_up(d2, 128)
    d3p = _round_up(d3, 128)
    padded = (
        _pad_to(w1, (d_in, d1p)), _pad_to(b1, (1, d1p)),
        _pad_to(w2, (d1p, d2p)), _pad_to(b2, (1, d2p)),
        _pad_to(w3, (d2p, d3p)), _pad_to(b3, (1, d3p)),
    )
    return padded, (d1, d2, d3)


def _head_kernel(x_ref, w1_ref, b1_ref, w2_ref, b2_ref, w3_ref, b3_ref,
                 x1_ref, x2_ref, x3_ref):
    # dropout -> identity (inference)
    x = x_ref[...]

    # x1 = tanh(dense1(x))
    h1 = jnp.tanh(
        jnp.dot(x, w1_ref[...], preferred_element_type=jnp.float32)
        + b1_ref[...])

    # x2 = tanh(dense2(dropout(x1)))
    h2 = jnp.tanh(
        jnp.dot(h1, w2_ref[...], preferred_element_type=jnp.float32)
        + b2_ref[...])

    # x3 = out_proj(dropout(x2))  (raw logits)
    h3 = (jnp.dot(h2, w3_ref[...], preferred_element_type=jnp.float32)
          + b3_ref[...])

    # Three lane-dense outputs (widths are multiples of 128) -> unmasked vst.
    x1_ref[...] = h1.astype(x1_ref.dtype)
    x2_ref[...] = h2.astype(x2_ref.dtype)
    x3_ref[...] = h3.astype(x3_ref.dtype)


def wav2vec2_classification_head(features, padded_params, out_dims, *,
                                 batch_block=2048,
                                 hidden_dtype=jnp.float32):
    """features: [B, hidden] -> (x1 [B,300], x2 [B,100], x3 [B,num_labels]).

    `padded_params` must come from pad_head_params (padding hoisted to init).
    `hidden_dtype=jnp.bfloat16` halves x1/x2 writeback (opt-in; breaks 1e-5
    reference comparisons).
    """
    w1p, b1p, w2p, b2p, w3p, b3p = padded_params
    d1, d2, d3 = out_dims
    B, d_in = features.shape
    d1p, d2p, d3p = w1p.shape[1], w2p.shape[1], w3p.shape[1]

    x = features.astype(jnp.float32)   # no hidden-dim / batch padding

    out_shapes = (
        jax.ShapeDtypeStruct((B, d1p), hidden_dtype),
        jax.ShapeDtypeStruct((B, d2p), hidden_dtype),
        jax.ShapeDtypeStruct((B, d3p), jnp.float32),
    )
    args = (x, w1p, b1p, w2p, b2p, w3p, b3p)

    if B <= batch_block:
        # Single block: no grid / pipeline machinery; everything resident in
        # VMEM, one shot on the MXU.
        o1, o2, o3 = pl.pallas_call(
            _head_kernel,
            out_shape=out_shapes,
            in_specs=[pl.BlockSpec(memory_space=pltpu.MemorySpace.VMEM)] * 7,
            out_specs=tuple(
                pl.BlockSpec(memory_space=pltpu.MemorySpace.VMEM)
                for _ in range(3)),
        )(*args)
    else:
        # Large batch: tile rows across a parallel grid axis (megacore on
        # v7x); weights map to block (0, 0) every step so they stay
        # VMEM-resident.  Partial last block handled by Pallas (no batch
        # round-up pad in the wrapper).
        tm = batch_block
        grid = (pl.cdiv(B, tm),)
        o1, o2, o3 = pl.pallas_call(
            _head_kernel,
            out_shape=out_shapes,
            grid=grid,
            in_specs=[
                pl.BlockSpec((tm, d_in), lambda i: (i, 0)),
                pl.BlockSpec(w1p.shape, lambda i: (0, 0)),
                pl.BlockSpec(b1p.shape, lambda i: (0, 0)),
                pl.BlockSpec(w2p.shape, lambda i: (0, 0)),
                pl.BlockSpec(b2p.shape, lambda i: (0, 0)),
                pl.BlockSpec(w3p.shape, lambda i: (0, 0)),
                pl.BlockSpec(b3p.shape, lambda i: (0, 0)),
            ],
            out_specs=(
                pl.BlockSpec((tm, d1p), lambda i: (i, 0)),
                pl.BlockSpec((tm, d2p), lambda i: (i, 0)),
                pl.BlockSpec((tm, d3p), lambda i: (i, 0)),
            ),
            compiler_params=pltpu.CompilerParams(
                dimension_semantics=("parallel",)),
        )(*args)

    # Slice the true (unpadded) column widths outside the kernel.
    x1 = o1[:, :d1]
    x2 = o2[:, :d2]
    x3 = o3[:, :d3]
    return x1, x2, x3


def init_params(key, hidden_size, num_labels):
    """Deterministic synthetic weights matching the nn.Linear shapes.

    PyTorch stores Linear weight as [out, in]; we initialize that way and
    transpose to [in, out] for the kernel's row-major matmul.
    """
    k1, k2, k3, k4, k5, k6 = jax.random.split(key, 6)
    w1 = jax.random.normal(k1, (300, hidden_size), jnp.float32) * 0.02
    b1 = jax.random.normal(k2, (300,), jnp.float32) * 0.02
    w2 = jax.random.normal(k3, (100, 300), jnp.float32) * 0.02
    b2 = jax.random.normal(k4, (100,), jnp.float32) * 0.02
    w3 = jax.random.normal(k5, (num_labels, 100), jnp.float32) * 0.02
    b3 = jax.random.normal(k6, (num_labels,), jnp.float32) * 0.02
    return (w1.T, b1.reshape(1, -1),
            w2.T, b2.reshape(1, -1),
            w3.T, b3.reshape(1, -1))


def _reference(features, params):
    w1, b1, w2, b2, w3, b3 = params
    r1 = jnp.tanh(features @ w1 + b1)
    r2 = jnp.tanh(r1 @ w2 + b2)
    r3 = r2 @ w3 + b3
    return r1, r2, r3


if __name__ == "__main__":
    # Small shapes consistent with the module:
    #   config.hidden_size -> 32, config.num_labels -> 5, batch -> 8
    batch, hidden_size, num_labels = 8, 32, 5

    key = jax.random.PRNGKey(0)
    k_x, k_p, k_big = jax.random.split(key, 3)
    features = jax.random.normal(k_x, (batch, hidden_size), jnp.float32)
    params = init_params(k_p, hidden_size, num_labels)
    padded_params, out_dims = pad_head_params(params)   # pad once at init

    # Small-batch path (grid-less, single VMEM block).
    x1, x2, x3 = wav2vec2_classification_head(features, padded_params, out_dims)
    jax.block_until_ready((x1, x2, x3))

    r1, r2, r3 = _reference(features, params)
    assert x1.shape == (batch, 300)
    assert x2.shape == (batch, 100)
    assert x3.shape == (batch, num_labels)
    assert jnp.allclose(x1, r1, atol=1e-5)
    assert jnp.allclose(x2, r2, atol=1e-5)
    assert jnp.allclose(x3, r3, atol=1e-5)

    # Large-batch path (grid over batch rows, parallel semantics, partial
    # last block handled by Pallas — no wrapper-side batch padding).
    big_batch = 600   # with batch_block=256 -> grid=3, last block partial
    feats_big = jax.random.normal(k_big, (big_batch, hidden_size), jnp.float32)
    y1, y2, y3 = wav2vec2_classification_head(
        feats_big, padded_params, out_dims, batch_block=256)
    jax.block_until_ready((y1, y2, y3))

    s1, s2, s3 = _reference(feats_big, params)
    assert y1.shape == (big_batch, 300)
    assert y2.shape == (big_batch, 100)
    assert y3.shape == (big_batch, num_labels)
    assert jnp.allclose(y1, s1, atol=1e-5)
    assert jnp.allclose(y2, s2, atol=1e-5)
    assert jnp.allclose(y3, s3, atol=1e-5)

    print("KERNEL_OK")
</pallas_src>

<mosaic_0001>
module attributes {stable_mosaic.version = 11 : i64} {
  func.func @_head_kernel(%arg0: memref<8x32xf32, #tpu.memory_space<vmem>>, %arg1: memref<32x384xf32, #tpu.memory_space<vmem>>, %arg2: memref<1x384xf32, #tpu.memory_space<vmem>>, %arg3: memref<384x128xf32, #tpu.memory_space<vmem>>, %arg4: memref<1x128xf32, #tpu.memory_space<vmem>>, %arg5: memref<128x128xf32, #tpu.memory_space<vmem>>, %arg6: memref<1x128xf32, #tpu.memory_space<vmem>>, %arg7: memref<8x384xf32, #tpu.memory_space<vmem>>, %arg8: memref<8x128xf32, #tpu.memory_space<vmem>>, %arg9: memref<8x128xf32, #tpu.memory_space<vmem>>) attributes {dimension_semantics = [], scalar_prefetch = 0 : i64, scratch_operands = 0 : i64, tpu.core_type = #tpu.core_type<tc>} {
    %c0 = arith.constant 0 : index
    %c0_0 = arith.constant 0 : index
    %0 = vector.load %arg0[%c0, %c0_0] : memref<8x32xf32, #tpu.memory_space<vmem>>, vector<8x32xf32>
    %c0_1 = arith.constant 0 : index
    %c0_2 = arith.constant 0 : index
    %1 = vector.load %arg1[%c0_1, %c0_2] : memref<32x384xf32, #tpu.memory_space<vmem>>, vector<32x384xf32>
    %cst = arith.constant dense<0.000000e+00> : vector<8x384xf32>
    %2 = tpu.matmul %0, %1, %cst {dimension_numbers = #tpu.dot_dimension_numbers<[1], [0], [0], [1], [0, 0, 1, 1], [], []>} : vector<8x32xf32>, vector<32x384xf32>, vector<8x384xf32> -> vector<8x384xf32>
    %c0_3 = arith.constant 0 : index
    %c0_4 = arith.constant 0 : index
    %3 = vector.load %arg2[%c0_3, %c0_4] : memref<1x384xf32, #tpu.memory_space<vmem>>, vector<1x384xf32>
    %4 = vector.broadcast %3 : vector<1x384xf32> to vector<8x384xf32>
    %5 = arith.addf %2, %4 : vector<8x384xf32>
    %6 = math.tanh %5 : vector<8x384xf32>
    %c0_5 = arith.constant 0 : index
    %c0_6 = arith.constant 0 : index
    %7 = vector.load %arg3[%c0_5, %c0_6] : memref<384x128xf32, #tpu.memory_space<vmem>>, vector<384x128xf32>
    %cst_7 = arith.constant dense<0.000000e+00> : vector<8x128xf32>
    %8 = tpu.matmul %6, %7, %cst_7 {dimension_numbers = #tpu.dot_dimension_numbers<[1], [0], [0], [1], [0, 0, 1, 1], [], []>} : vector<8x384xf32>, vector<384x128xf32>, vector<8x128xf32> -> vector<8x128xf32>
    %c0_8 = arith.constant 0 : index
    %c0_9 = arith.constant 0 : index
    %9 = vector.load %arg4[%c0_8, %c0_9] : memref<1x128xf32, #tpu.memory_space<vmem>>, vector<1x128xf32>
    %10 = vector.broadcast %9 : vector<1x128xf32> to vector<8x128xf32>
    %11 = arith.addf %8, %10 : vector<8x128xf32>
    %12 = math.tanh %11 : vector<8x128xf32>
    %c0_10 = arith.constant 0 : index
    %c0_11 = arith.constant 0 : index
    %13 = vector.load %arg5[%c0_10, %c0_11] : memref<128x128xf32, #tpu.memory_space<vmem>>, vector<128x128xf32>
    %cst_12 = arith.constant dense<0.000000e+00> : vector<8x128xf32>
    %14 = tpu.matmul %12, %13, %cst_12 {dimension_numbers = #tpu.dot_dimension_numbers<[1], [0], [0], [1], [0, 0, 1, 1], [], []>} : vector<8x128xf32>, vector<128x128xf32>, vector<8x128xf32> -> vector<8x128xf32>
    %c0_13 = arith.constant 0 : index
    %c0_14 = arith.constant 0 : index
    %15 = vector.load %arg6[%c0_13, %c0_14] : memref<1x128xf32, #tpu.memory_space<vmem>>, vector<1x128xf32>
    %16 = vector.broadcast %15 : vector<1x128xf32> to vector<8x128xf32>
    %17 = arith.addf %14, %16 : vector<8x128xf32>
    %c0_15 = arith.constant 0 : index
    %c0_16 = arith.constant 0 : index
    %18 = vector.load %arg7[%c0_15, %c0_16] : memref<8x384xf32, #tpu.memory_space<vmem>>, vector<8x384xf32>
    tpu.vector_store %arg7[%c0_15, %c0_16], %6 {strides = array<i32>} : memref<8x384xf32, #tpu.memory_space<vmem>>, vector<8x384xf32>,
    %c0_17 = arith.constant 0 : index
    %c0_18 = arith.constant 0 : index
    %19 = vector.load %arg8[%c0_17, %c0_18] : memref<8x128xf32, #tpu.memory_space<vmem>>, vector<8x128xf32>
    tpu.vector_store %arg8[%c0_17, %c0_18], %12 {strides = array<i32>} : memref<8x128xf32, #tpu.memory_space<vmem>>, vector<8x128xf32>,
    %c0_19 = arith.constant 0 : index
    %c0_20 = arith.constant 0 : index
    %20 = vector.load %arg9[%c0_19, %c0_20] : memref<8x128xf32, #tpu.memory_space<vmem>>, vector<8x128xf32>
    tpu.vector_store %arg9[%c0_19, %c0_20], %17 {strides = array<i32>} : memref<8x128xf32, #tpu.memory_space<vmem>>, vector<8x128xf32>,
    return
  }
}

</mosaic_0001>

<llo_original>
// kernel: tpu_custom_call.1
$region0: #{tpu_custom_call.1}
  #allocation0 [shape = 'u32[]', space=smem, size = 0x4, offset = 0x4, fixed_abs, tag = 'smem constant byte address 0x4 - core index']
  #allocation1 [shape = 'u32[72,128]{1,0:T(1,128)}', space=vmem, size = 0x9000, scoped, tag = 'internal scratch']
  %s0 = inlined_call_operand.hbm [shape: f32[8,32], index: 0, kind: input, shape index: {}]
  %s1 = inlined_call_operand.hbm [shape: f32[32,384], index: 1, kind: input, shape index: {}]
  %s2 = inlined_call_operand.hbm [shape: f32[1,384], index: 2, kind: input, shape index: {}]
  %s3 = inlined_call_operand.hbm [shape: f32[384,128], index: 3, kind: input, shape index: {}]
  %s4 = inlined_call_operand.vmem [shape: f32[1,128], index: 4, kind: input, shape index: {}]
  %s5 = inlined_call_operand.hbm [shape: f32[128,128], index: 5, kind: input, shape index: {}]
  %s6 = inlined_call_operand.vmem [shape: f32[1,128], index: 6, kind: input, shape index: {}]
  %s7 = inlined_call_operand.hbm [shape: f32[8,384], index: 7, kind: output, shape index: {0}]
  %s8 = inlined_call_operand.hbm [shape: f32[8,128], index: 8, kind: output, shape index: {1}]
  %s9 = inlined_call_operand.hbm [shape: f32[8,128], index: 9, kind: output, shape index: {2}]
  %10 = xla_tuple %s7, %s8, %s9
  %s11 = sld [smem:[#allocation0]]
  $region74: #{tpu_custom_call.1} parent=0
    _
  %s13 = ssub.s32 1, %s11
  %s14 = scalar_select 0, %s13, %s11
  $region1: #{tpu_custom_call.1} parent=0
    #allocation2 [shape = 'u8[4096]{0}', space=vmem, size = 0x1000, scoped, tag = 'input window, operand 0, single buffered']
    #allocation3 [shape = 's32[1]{0}', space=sflag, size = 0x4, scoped, tag = 'scoped memory for tpu_custom_call.1']
    #allocation4 [shape = 's32[1]{0}', space=sflag, size = 0x4, scoped, tag = 'scoped memory for tpu_custom_call.1']
    #allocation5 [shape = 'u8[49152]{0}', space=vmem, size = 0xc000, scoped, tag = 'input window, operand 1, single buffered']
    #allocation6 [shape = 's32[1]{0}', space=sflag, size = 0x4, scoped, tag = 'scoped memory for tpu_custom_call.1']
    #allocation7 [shape = 'u8[1536]{0}', space=vmem, size = 0x800, scoped, tag = 'input window, operand 2, single buffered']
    #allocation8 [shape = 'u8[196608]{0}', space=vmem, size = 0x30000, scoped, tag = 'input window, operand 3, single buffered']
    #allocation9 [shape = 's32[1]{0}', space=sflag, size = 0x4, scoped, tag = 'scoped memory for tpu_custom_call.1']
    #allocation10 [shape = 'u8[65536]{0}', space=vmem, size = 0x10000, scoped, tag = 'input window, operand 5, single buffered']
    #allocation11 [shape = 'u8[12288]{0}', space=vmem, size = 0x3000, scoped, tag = 'output window, operand 0, single buffered']
    #allocation12 [shape = 'u8[4096]{0}', space=vmem, size = 0x1000, scoped, tag = 'output window, operand 1, single buffered']
    #allocation13 [shape = 's32[1]{0}', space=sflag, size = 0x4, scoped, tag = 'scoped memory for tpu_custom_call.1']
    #allocation14 [shape = 'u8[4096]{0}', space=vmem, size = 0x1000, scoped, tag = 'output window, operand 2, single buffered']
    %15 = vsyncpa [#allocation3], 0
    %16 = vsyncpa [#allocation6], 0
    %17 = vsyncpa [#allocation9], 0
    %18 = vsyncpa [#allocation4], 0
    %19 = vsyncpa [#allocation13], 0
    // Predicated region
    $region2: #{tpu_custom_call.1} parent=1 // pred_check
      _
    $region3: #{tpu_custom_call.1} parent=1 // pred_check_branch
      %21 = sbr.rel (0) target = $region5
    $region4: #{tpu_custom_call.1} parent=1 // pred_region
      %23 = vsyncadd [#allocation3], 0
      %s25 = sshll.u32 %s0, 4
      %s26 = int_to_ptr.hbm [resolvable:$true] %s25
      %s27 = sshll.u32 [#allocation2], 4
      %s28 = int_to_ptr.vmem [resolvable:$true] %s27
      %30 = dma.hbm_to_vmem [thread:$0]  %s26, 128, %s28, [#allocation3]
    $region5: #{tpu_custom_call.1} parent=1 // pred_fallthru
      _
    // Predicated region
    $region6: #{tpu_custom_call.1} parent=1 // pred_check
      _
    $region7: #{tpu_custom_call.1} parent=1 // pred_check_branch
      %32 = sbr.rel (0) target = $region9
    $region8: #{tpu_custom_call.1} parent=1 // pred_region
      %34 = vsyncadd [#allocation6], 0
      %s35 = sshll.u32 %s1, 4
      %s36 = int_to_ptr.hbm [resolvable:$true] %s35
      %s37 = sshll.u32 [#allocation5], 4
      %s38 = int_to_ptr.vmem [resolvable:$true] %s37
      %43 = dma.hbm_to_vmem [thread:$0]  %s36, 1536, %s38, [#allocation6], 384, 384, 24
    $region9: #{tpu_custom_call.1} parent=1 // pred_fallthru
      _
    // Predicated region
    $region10: #{tpu_custom_call.1} parent=1 // pred_check
      _
    $region11: #{tpu_custom_call.1} parent=1 // pred_check_branch
      %45 = sbr.rel (0) target = $region13
    $region12: #{tpu_custom_call.1} parent=1 // pred_region
      %47 = vsyncadd [#allocation6], 0
      %s49 = sshll.u32 %s2, 4
      %s50 = int_to_ptr.hbm [resolvable:$true] %s49
      %s51 = sshll.u32 [#allocation7], 4
      %s52 = int_to_ptr.vmem [resolvable:$true] %s51
      %54 = dma.hbm_to_vmem [thread:$0]  %s50, 48, %s52, [#allocation6]
    $region13: #{tpu_custom_call.1} parent=1 // pred_fallthru
      _
    // Predicated region
    $region14: #{tpu_custom_call.1} parent=1 // pred_check
      _
    $region15: #{tpu_custom_call.1} parent=1 // pred_check_branch
      %56 = sbr.rel (0) target = $region17
    $region16: #{tpu_custom_call.1} parent=1 // pred_region
      %58 = vsyncadd [#allocation9], 0
      %s59 = sshll.u32 %s3, 4
      %s60 = int_to_ptr.hbm [resolvable:$true] %s59
      %s61 = sshll.u32 [#allocation8], 4
      %s62 = int_to_ptr.vmem [resolvable:$true] %s61
      %67 = dma.hbm_to_vmem [thread:$0]  %s60, 6144, %s62, [#allocation9], 128, 128, 8
    $region17: #{tpu_custom_call.1} parent=1 // pred_fallthru
      _
    // Predicated region
    $region18: #{tpu_custom_call.1} parent=1 // pred_check
      _
    $region19: #{tpu_custom_call.1} parent=1 // pred_check_branch
      %69 = sbr.rel (0) target = $region21
    $region20: #{tpu_custom_call.1} parent=1 // pred_region
      _
    $region21: #{tpu_custom_call.1} parent=1 // pred_fallthru
      _
    // Predicated region
    $region22: #{tpu_custom_call.1} parent=1 // pred_check
      _
    $region23: #{tpu_custom_call.1} parent=1 // pred_check_branch
      %71 = sbr.rel (0) target = $region25
    $region24: #{tpu_custom_call.1} parent=1 // pred_region
      %73 = vsyncadd [#allocation9], 0
      %s74 = sshll.u32 %s5, 4
      %s75 = int_to_ptr.hbm [resolvable:$true] %s74
      %s76 = sshll.u32 [#allocation10], 4
      %s77 = int_to_ptr.vmem [resolvable:$true] %s76
      %82 = dma.hbm_to_vmem [thread:$0]  %s75, 2048, %s77, [#allocation9], 128, 128, 8
    $region25: #{tpu_custom_call.1} parent=1 // pred_fallthru
      _
    // Predicated region
    $region26: #{tpu_custom_call.1} parent=1 // pred_check
      _
    $region27: #{tpu_custom_call.1} parent=1 // pred_check_branch
      %84 = sbr.rel (0) target = $region29
    $region28: #{tpu_custom_call.1} parent=1 // pred_region
      _
    $region29: #{tpu_custom_call.1} parent=1 // pred_fallthru
      _
    // Predicated region
    $region30: #{tpu_custom_call.1} parent=1 // pred_check
      _
    $region31: #{tpu_custom_call.1} parent=1 // pred_check_branch
      %86 = sbr.rel (0) target = $region33
    $region32: #{tpu_custom_call.1} parent=1 // pred_region
      %88 = dma.done [#allocation3], 128
    $region33: #{tpu_custom_call.1} parent=1 // pred_fallthru
      _
    // Predicated region
    $region34: #{tpu_custom_call.1} parent=1 // pred_check
      _
    $region35: #{tpu_custom_call.1} parent=1 // pred_check_branch
      %90 = sbr.rel (0) target = $region37
    $region36: #{tpu_custom_call.1} parent=1 // pred_region
      %92 = dma.done [#allocation6], 1536
    $region37: #{tpu_custom_call.1} parent=1 // pred_fallthru
      _
    // Predicated region
    $region38: #{tpu_custom_call.1} parent=1 // pred_check
      _
    $region39: #{tpu_custom_call.1} parent=1 // pred_check_branch
      %94 = sbr.rel (0) target = $region41
    $region40: #{tpu_custom_call.1} parent=1 // pred_region
      %96 = dma.done [#allocation6], 48
    $region41: #{tpu_custom_call.1} parent=1 // pred_fallthru
      _
    // Predicated region
    $region42: #{tpu_custom_call.1} parent=1 // pred_check
      _
    $region43: #{tpu_custom_call.1} parent=1 // pred_check_branch
      %98 = sbr.rel (0) target = $region45
    $region44: #{tpu_custom_call.1} parent=1 // pred_region
      %100 = dma.done [#allocation9], 6144
    $region45: #{tpu_custom_call.1} parent=1 // pred_fallthru
      _
    // Predicated region
    $region46: #{tpu_custom_call.1} parent=1 // pred_check
      _
    $region47: #{tpu_custom_call.1} parent=1 // pred_check_branch
      %102 = sbr.rel (0) target = $region49
    $region48: #{tpu_custom_call.1} parent=1 // pred_region
      %104 = dma.done [#allocation9], 2048
    $region49: #{tpu_custom_call.1} parent=1 // pred_fallthru
      _
    %v105 = vld [vmem:[#allocation2] sm:$0xff]
    %v106 = vld [vmem:[#allocation5] sm:$0xff]
    %v107 = vld [vmem:[#allocation5 + $0x8] sm:$0xff]
    %v108 = vld [vmem:[#allocation5 + $0x10] sm:$0xff]
    %v109 = vld [vmem:[#allocation5 + $0x18] sm:$0xff]
    %v110 = vld [vmem:[#allocation5 + $0x20] sm:$0xff]
    %v111 = vld [vmem:[#allocation5 + $0x28] sm:$0xff]
    %v112 = vld [vmem:[#allocation5 + $0x30] sm:$0xff]
    %v113 = vld [vmem:[#allocation5 + $0x38] sm:$0xff]
    %v114 = vld [vmem:[#allocation5 + $0x40] sm:$0xff]
    %v115 = vld [vmem:[#allocation5 + $0x48] sm:$0xff]
    %v116 = vld [vmem:[#allocation5 + $0x50] sm:$0xff]
    %v117 = vld [vmem:[#allocation5 + $0x58] sm:$0xff]
    %v118 = vld [vmem:[#allocation7] sm:$0x7]
    %v120 = vperm.slane %v118, 0
    %v121 = vperm.slane %v118, 1
    %v122 = vperm.slane %v118, 2
    %vm126 = vcmask 261120
    %v128 = vsel %vm126, %v105, 0
    %130 = vmatpush.msra.mxu0 0.0
    %131 = vmatpush.msra.mxu0 0.0
    %132 = vmatpush.msra.mxu0 0.0
    %133 = vmatpush.msra.mxu0 0.0
    %134 = vmatpush.msra.mxu0 0.0
    %135 = vmatpush.msra.mxu0 0.0
    %136 = vmatpush.msra.mxu0 0.0
    %137 = vmatpush.msra.mxu0 0.0
    %138 = vmatpush.msra.mxu0 0.0
    %139 = vmatpush.msra.mxu0 0.0
    %140 = vmatpush.msra.mxu0 0.0
    %141 = vmatpush.msra.mxu0 0.0
    %142 = vmatpush.msra.mxu0 %v115
    %143 = vmatpush.msra.mxu0 %v112
    %144 = vmatpush.msra.mxu0 %v109
    %145 = vmatpush.msra.mxu0 %v106
    %146 = vmatmul.f32.gmra.mxu0 %v128
    %v147 = vpop.f32.mrf.mxu0
    %v148 = vadd.f32 %v120, %v147
    %149 = vdwg.mxu0
    %150 = vmatpush.msra.mxu0 0.0
    %151 = vmatpush.msra.mxu0 0.0
    %152 = vmatpush.msra.mxu0 0.0
    %153 = vmatpush.msra.mxu0 0.0
    %154 = vmatpush.msra.mxu0 0.0
    %155 = vmatpush.msra.mxu0 0.0
    %156 = vmatpush.msra.mxu0 0.0
    %157 = vmatpush.msra.mxu0 0.0
    %158 = vmatpush.msra.mxu0 0.0
    %159 = vmatpush.msra.mxu0 0.0
    %160 = vmatpush.msra.mxu0 0.0
    %161 = vmatpush.msra.mxu0 0.0
    %162 = vmatpush.msra.mxu0 %v116
    %163 = vmatpush.msra.mxu0 %v113
    %164 = vmatpush.msra.mxu0 %v110
    %165 = vmatpush.msra.mxu0 %v107
    %166 = vmatmul.f32.gmra.mxu0 %v128
    %v167 = vpop.f32.mrf.mxu0
    %v168 = vadd.f32 %v121, %v167
    %169 = vdwg.mxu0
    %170 = vmatpush.msra.mxu0 0.0
    %171 = vmatpush.msra.mxu0 0.0
    %172 = vmatpush.msra.mxu0 0.0
    %173 = vmatpush.msra.mxu0 0.0
    %174 = vmatpush.msra.mxu0 0.0
    %175 = vmatpush.msra.mxu0 0.0
    %176 = vmatpush.msra.mxu0 0.0
    %177 = vmatpush.msra.mxu0 0.0
    %178 = vmatpush.msra.mxu0 0.0
    %179 = vmatpush.msra.mxu0 0.0
    %180 = vmatpush.msra.mxu0 0.0
    %181 = vmatpush.msra.mxu0 0.0
    %182 = vmatpush.msra.mxu0 %v117
    %183 = vmatpush.msra.mxu0 %v114
    %184 = vmatpush.msra.mxu0 %v111
    %185 = vmatpush.msra.mxu0 %v108
    %186 = vmatmul.f32.gmra.mxu0 %v128
    %v187 = vpop.f32.mrf.mxu0
    %v188 = vadd.f32 %v122, %v187
    %189 = vdwg.mxu0
    %v190 = vtanh.pop %v148
    %v191 = vtanh.pop %v168
    %v192 = vtanh.pop %v188
    %v193 = vld [vmem:[#allocation8] sm:$0xff]
    %v194 = vld [vmem:[#allocation8 + $0x8] sm:$0xff]
    %v195 = vld [vmem:[#allocation8 + $0x10] sm:$0xff]
    %v196 = vld [vmem:[#allocation8 + $0x18] sm:$0xff]
    %v197 = vld [vmem:[#allocation8 + $0x20] sm:$0xff]
    %v198 = vld [vmem:[#allocation8 + $0x28] sm:$0xff]
    %v199 = vld [vmem:[#allocation8 + $0x30] sm:$0xff]
    %v200 = vld [vmem:[#allocation8 + $0x38] sm:$0xff]
    %v201 = vld [vmem:[#allocation8 + $0x40] sm:$0xff]
    %v202 = vld [vmem:[#allocation8 + $0x48] sm:$0xff]
    %v203 = vld [vmem:[#allocation8 + $0x50] sm:$0xff]
    %v204 = vld [vmem:[#allocation8 + $0x58] sm:$0xff]
    %v205 = vld [vmem:[#allocation8 + $0x60] sm:$0xff]
    %v206 = vld [vmem:[#allocation8 + $0x68] sm:$0xff]
    %v207 = vld [vmem:[#allocation8 + $0x70] sm:$0xff]
    %v208 = vld [vmem:[#allocation8 + $0x78] sm:$0xff]
    %v209 = vld [vmem:[#allocation8 + $0x80] sm:$0xff]
    %v210 = vld [vmem:[#allocation8 + $0x88] sm:$0xff]
    %v211 = vld [vmem:[#allocation8 + $0x90] sm:$0xff]
    %v212 = vld [vmem:[#allocation8 + $0x98] sm:$0xff]
    %v213 = vld [vmem:[#allocation8 + $0xa0] sm:$0xff]
    %v214 = vld [vmem:[#allocation8 + $0xa8] sm:$0xff]
    %v215 = vld [vmem:[#allocation8 + $0xb0] sm:$0xff]
    %v216 = vld [vmem:[#allocation8 + $0xb8] sm:$0xff]
    %v217 = vld [vmem:[#allocation8 + $0xc0] sm:$0xff]
    %v218 = vld [vmem:[#allocation8 + $0xc8] sm:$0xff]
    %v219 = vld [vmem:[#allocation8 + $0xd0] sm:$0xff]
    %v220 = vld [vmem:[#allocation8 + $0xd8] sm:$0xff]
    %v221 = vld [vmem:[#allocation8 + $0xe0] sm:$0xff]
    %v222 = vld [vmem:[#allocation8 + $0xe8] sm:$0xff]
    %v223 = vld [vmem:[#allocation8 + $0xf0] sm:$0xff]
    %v224 = vld [vmem:[#allocation8 + $0xf8] sm:$0xff]
    %v225 = vld [vmem:[#allocation8 + $0x100] sm:$0xff]
    %v226 = vld [vmem:[#allocation8 + $0x108] sm:$0xff]
    %v227 = vld [vmem:[#allocation8 + $0x110] sm:$0xff]
    %v228 = vld [vmem:[#allocation8 + $0x118] sm:$0xff]
    %v229 = vld [vmem:[#allocation8 + $0x120] sm:$0xff]
    %v230 = vld [vmem:[#allocation8 + $0x128] sm:$0xff]
    %v231 = vld [vmem:[#allocation8 + $0x130] sm:$0xff]
    %v232 = vld [vmem:[#allocation8 + $0x138] sm:$0xff]
    %v233 = vld [vmem:[#allocation8 + $0x140] sm:$0xff]
    %v234 = vld [vmem:[#allocation8 + $0x148] sm:$0xff]
    %v235 = vld [vmem:[#allocation8 + $0x150] sm:$0xff]
    %v236 = vld [vmem:[#allocation8 + $0x158] sm:$0xff]
    %v237 = vld [vmem:[#allocation8 + $0x160] sm:$0xff]
    %v238 = vld [vmem:[#allocation8 + $0x168] sm:$0xff]
    %v239 = vld [vmem:[#allocation8 + $0x170] sm:$0xff]
    %v240 = vld [vmem:[#allocation8 + $0x178] sm:$0xff]
    %v241 = vld [vmem:[%s4] sm:$0x1]
    %v243 = vperm.slane %v241, 0
    %245 = vmatpush.msra.mxu0 %v208
    %246 = vmatpush.msra.mxu0 %v207
    %247 = vmatpush.msra.mxu0 %v206
    %248 = vmatpush.msra.mxu0 %v205
    %249 = vmatpush.msra.mxu0 %v204
    %250 = vmatpush.msra.mxu0 %v203
    %251 = vmatpush.msra.mxu0 %v202
    %252 = vmatpush.msra.mxu0 %v201
    %253 = vmatpush.msra.mxu0 %v200
    %254 = vmatpush.msra.mxu0 %v199
    %255 = vmatpush.msra.mxu0 %v198
    %256 = vmatpush.msra.mxu0 %v197
    %257 = vmatpush.msra.mxu0 %v196
    %258 = vmatpush.msra.mxu0 %v195
    %259 = vmatpush.msra.mxu0 %v194
    %260 = vmatpush.msra.mxu0 %v193
    %261 = vmatmul.f32.gmra.mxu0 %v190
    %v262 = vpop.f32.mrf.mxu0
    %v263 = vadd.f32 %v243, %v262
    %264 = vdwg.mxu0
    %265 = vmatpush.msra.mxu0 %v224
    %266 = vmatpush.msra.mxu0 %v223
    %267 = vmatpush.msra.mxu0 %v222
    %268 = vmatpush.msra.mxu0 %v221
    %269 = vmatpush.msra.mxu0 %v220
    %270 = vmatpush.msra.mxu0 %v219
    %271 = vmatpush.msra.mxu0 %v218
    %272 = vmatpush.msra.mxu0 %v217
    %273 = vmatpush.msra.mxu0 %v216
    %274 = vmatpush.msra.mxu0 %v215
    %275 = vmatpush.msra.mxu0 %v214
    %276 = vmatpush.msra.mxu0 %v213
    %277 = vmatpush.msra.mxu0 %v212
    %278 = vmatpush.msra.mxu0 %v211
    %279 = vmatpush.msra.mxu0 %v210
    %280 = vmatpush.msra.mxu0 %v209
    %281 = vmatmul.f32.gmra.mxu0 %v191
    %v282 = vpop.f32.mrf.mxu0
    %v283 = vadd.f32 %v263, %v282
    %284 = vdwg.mxu0
    %285 = vmatpush.msra.mxu0 %v240
    %286 = vmatpush.msra.mxu0 %v239
    %287 = vmatpush.msra.mxu0 %v238
    %288 = vmatpush.msra.mxu0 %v237
    %289 = vmatpush.msra.mxu0 %v236
    %290 = vmatpush.msra.mxu0 %v235
    %291 = vmatpush.msra.mxu0 %v234
    %292 = vmatpush.msra.mxu0 %v233
    %293 = vmatpush.msra.mxu0 %v232
    %294 = vmatpush.msra.mxu0 %v231
    %295 = vmatpush.msra.mxu0 %v230
    %296 = vmatpush.msra.mxu0 %v229
    %297 = vmatpush.msra.mxu0 %v228
    %298 = vmatpush.msra.mxu0 %v227
    %299 = vmatpush.msra.mxu0 %v226
    %300 = vmatpush.msra.mxu0 %v225
    %301 = vmatmul.f32.gmra.mxu0 %v192
    %v302 = vpop.f32.mrf.mxu0
    %v303 = vadd.f32 %v283, %v302
    %304 = vdwg.mxu0
    %v305 = vtanh.pop %v303
    %v306 = vld [vmem:[#allocation10] sm:$0xff]
    %v307 = vld [vmem:[#allocation10 + $0x8] sm:$0xff]
    %v308 = vld [vmem:[#allocation10 + $0x10] sm:$0xff]
    %v309 = vld [vmem:[#allocation10 + $0x18] sm:$0xff]
    %v310 = vld [vmem:[#allocation10 + $0x20] sm:$0xff]
    %v311 = vld [vmem:[#allocation10 + $0x28] sm:$0xff]
    %v312 = vld [vmem:[#allocation10 + $0x30] sm:$0xff]
    %v313 = vld [vmem:[#allocation10 + $0x38] sm:$0xff]
    %v314 = vld [vmem:[#allocation10 + $0x40] sm:$0xff]
    %v315 = vld [vmem:[#allocation10 + $0x48] sm:$0xff]
    %v316 = vld [vmem:[#allocation10 + $0x50] sm:$0xff]
    %v317 = vld [vmem:[#allocation10 + $0x58] sm:$0xff]
    %v318 = vld [vmem:[#allocation10 + $0x60] sm:$0xff]
    %v319 = vld [vmem:[#allocation10 + $0x68] sm:$0xff]
    %v320 = vld [vmem:[#allocation10 + $0x70] sm:$0xff]
    %v321 = vld [vmem:[#allocation10 + $0x78] sm:$0xff]
    %v322 = vld [vmem:[%s6] sm:$0x1]
    %v324 = vperm.slane %v322, 0
    %326 = vmatpush.msra.mxu0 %v321
    %327 = vmatpush.msra.mxu0 %v320
    %328 = vmatpush.msra.mxu0 %v319
    %329 = vmatpush.msra.mxu0 %v318
    %330 = vmatpush.msra.mxu0 %v317
    %331 = vmatpush.msra.mxu0 %v316
    %332 = vmatpush.msra.mxu0 %v315
    %333 = vmatpush.msra.mxu0 %v314
    %334 = vmatpush.msra.mxu0 %v313
    %335 = vmatpush.msra.mxu0 %v312
    %336 = vmatpush.msra.mxu0 %v311
    %337 = vmatpush.msra.mxu0 %v310
    %338 = vmatpush.msra.mxu0 %v309
    %339 = vmatpush.msra.mxu0 %v308
    %340 = vmatpush.msra.mxu0 %v307
    %341 = vmatpush.msra.mxu0 %v306
    %342 = vmatmul.f32.gmra.mxu0 %v305
    %v343 = vpop.f32.mrf.mxu0
    %v344 = vadd.f32 %v324, %v343
    %345 = vdwg.mxu0
    %346 = vst [vmem:[#allocation11] sm:$0xff] %v190
    %347 = vst [vmem:[#allocation11 + $0x8] sm:$0xff] %v191
    %348 = vst [vmem:[#allocation11 + $0x10] sm:$0xff] %v192
    %349 = vst [vmem:[#allocation12] sm:$0xff] %v305
    %350 = vst [vmem:[#allocation14] sm:$0xff] %v344
    // Predicated region
    $region50: #{tpu_custom_call.1} parent=1 // pred_check
      _
    $region51: #{tpu_custom_call.1} parent=1 // pred_check_branch
      %352 = sbr.rel (0) target = $region53
    $region52: #{tpu_custom_call.1} parent=1 // pred_region
      %354 = vsyncadd [#allocation4], 0
      %s356 = sshll.u32 [#allocation11], 4
      %s357 = int_to_ptr.vmem [resolvable:$true] %s356
      %s358 = sshll.u32 %s7, 4
      %s359 = int_to_ptr.hbm [resolvable:$true] %s358
      %361 = dma.vmem_to_hbm [thread:$0]  %s357, 384, %s359, [#allocation4]
    $region53: #{tpu_custom_call.1} parent=1 // pred_fallthru
      _
    // Predicated region
    $region54: #{tpu_custom_call.1} parent=1 // pred_check
      _
    $region55: #{tpu_custom_call.1} parent=1 // pred_check_branch
      %363 = sbr.rel (0) target = $region57
    $region56: #{tpu_custom_call.1} parent=1 // pred_region
      %365 = vsyncadd [#allocation13], 0
      %s367 = sshll.u32 [#allocation12], 4
      %s368 = int_to_ptr.vmem [resolvable:$true] %s367
      %s369 = sshll.u32 %s8, 4
      %s370 = int_to_ptr.hbm [resolvable:$true] %s369
      %372 = dma.vmem_to_hbm [thread:$0]  %s368, 128, %s370, [#allocation13]
    $region57: #{tpu_custom_call.1} parent=1 // pred_fallthru
      _
    // Predicated region
    $region58: #{tpu_custom_call.1} parent=1 // pred_check
      _
    $region59: #{tpu_custom_call.1} parent=1 // pred_check_branch
      %374 = sbr.rel (0) target = $region61
    $region60: #{tpu_custom_call.1} parent=1 // pred_region
      %376 = vsyncadd [#allocation13], 0
      %s378 = sshll.u32 [#allocation14], 4
      %s379 = int_to_ptr.vmem [resolvable:$true] %s378
      %s380 = sshll.u32 %s9, 4
      %s381 = int_to_ptr.hbm [resolvable:$true] %s380
      %383 = dma.vmem_to_hbm [thread:$0]  %s379, 128, %s381, [#allocation13]
    $region61: #{tpu_custom_call.1} parent=1 // pred_fallthru
      _
    // Predicated region
    $region62: #{tpu_custom_call.1} parent=1 // pred_check
      _
    $region63: #{tpu_custom_call.1} parent=1 // pred_check_branch
      %385 = sbr.rel (0) target = $region65
    $region64: #{tpu_custom_call.1} parent=1 // pred_region
      %387 = dma.done [#allocation4], 384
    $region65: #{tpu_custom_call.1} parent=1 // pred_fallthru
      _
    // Predicated region
    $region66: #{tpu_custom_call.1} parent=1 // pred_check
      _
    $region67: #{tpu_custom_call.1} parent=1 // pred_check_branch
      %389 = sbr.rel (0) target = $region69
    $region68: #{tpu_custom_call.1} parent=1 // pred_region
      %391 = dma.done [#allocation13], 128
    $region69: #{tpu_custom_call.1} parent=1 // pred_fallthru
      _
    // Predicated region
    $region70: #{tpu_custom_call.1} parent=1 // pred_check
      _
    $region71: #{tpu_custom_call.1} parent=1 // pred_check_branch
      %393 = sbr.rel (0) target = $region73
    $region72: #{tpu_custom_call.1} parent=1 // pred_region
      %395 = dma.done [#allocation13], 128
    $region73: #{tpu_custom_call.1} parent=1 // pred_fallthru
      _
    %396 = vsyncpa [#allocation3], 1
    %397 = vsyncpa [#allocation6], 1
    %398 = vsyncpa [#allocation9], 1
    %399 = vsyncpa [#allocation4], 1
    %400 = vsyncpa [#allocation13], 1

</llo_original>
